<compile_context>
chip_gen: v7x
topology: tpu7x:2x2x1
jax: 0.10.0
libtpu: 0.0.40
codegen_flags: <defaults>
</compile_context>

<pallas_src>
import jax
import jax.numpy as jnp
from jax.experimental import pallas as pl
from jax.experimental.pallas import tpu as pltpu


def _decode_frames_kernel(x_ref, wT_ref, b_ref, o_ref):
    # x_ref : (BF, K, TP)   BF frames in ConvTranspose2d input layout
    #                       (channels, spatial) -- used directly as GEMM RHS,
    #                       no transpose anywhere.
    # wT_ref: (Nc, K)       transposed GEMM weight (resident; constant index_map).
    # b_ref : (Nc, 1)       per-output-row bias column.
    # o_ref : (BF, Nc, TP)  one (conv_out*p*p) patch column per spatial position.
    wT = wT_ref[...]
    bias = b_ref[...]
    for bf in range(x_ref.shape[0]):          # static unroll over frames in block
        acc = jnp.dot(wT, x_ref[bf], preferred_element_type=jnp.float32)
        o_ref[bf] = (acc + bias).astype(o_ref.dtype)


def _vmem_budget_bytes():
    """~75% of this chip's per-core VMEM (≈48 MiB on v7x, ≈96 MiB on v5e/v6e)."""
    cap = None
    try:
        cap = getattr(pltpu.get_tpu_info(), "vmem_capacity_bytes", None)
    except Exception:
        cap = None
    if not cap:
        cap = 64 * 2**20                       # conservative (v7x-sized) fallback
    return int(cap * 3 // 4)


def _choose_tiling(F, K, P, Nc, in_itemsize, out_itemsize, vmem_budget):
    # Weight + bias: constant index_map (never re-fetched), but the default
    # pipeline still holds two buffers -> count both in the estimate.
    weight_bytes = 2 * (Nc * K + Nc) * in_itemsize

    def step_vmem(bf, tp):
        # double-buffered input + output tiles, plus resident weight/bias
        return weight_bytes + 2 * bf * tp * (K * in_itemsize + Nc * out_itemsize)

    def step_traffic(bf, tp):
        return bf * tp * (K * in_itemsize + Nc * out_itemsize)

    # Spatial tile: whole frame unless P is a 128-multiple and a whole frame
    # would blow the VMEM budget (block last dim must be a 128-multiple or the
    # full extent).
    tile_p = P
    if P % 128 == 0:
        while tile_p > 128 and step_vmem(1, tile_p) > vmem_budget:
            half = tile_p // 2
            if half % 128 != 0 or P % half != 0:
                break
            tile_p = half

    n_chunks = P // tile_p
    target_traffic = 4 * 2**20                 # ~4 MiB of HBM traffic per grid step

    bf = 1
    for cand in range(F, 0, -1):               # largest frame-block that fits
        if F % cand:
            continue
        if step_vmem(cand, tile_p) > vmem_budget:
            continue
        if cand > 1 and step_traffic(cand, tile_p) > target_traffic:
            continue
        if cand > 1 and (F // cand) * n_chunks < 2:
            continue                           # keep >= 2 steps for v7x's 2 TCs
        bf = cand
        break
    return bf, tile_p


def _decode_frames(x3, wT, bias_col):
    F, K, P = x3.shape
    Nc = wT.shape[0]
    itemsize = jnp.dtype(x3.dtype).itemsize
    budget = _vmem_budget_bytes()
    bf, tile_p = _choose_tiling(F, K, P, Nc, itemsize, itemsize, budget)
    assert F % bf == 0 and P % tile_p == 0

    return pl.pallas_call(
        _decode_frames_kernel,
        out_shape=jax.ShapeDtypeStruct((F, Nc, P), x3.dtype),
        grid_spec=pltpu.PrefetchScalarGridSpec(
            num_scalar_prefetch=0,
            grid=(F // bf, P // tile_p),
            in_specs=[
                pl.BlockSpec((bf, K, tile_p), lambda f, c: (f, 0, c)),  # frames chunk
                pl.BlockSpec((Nc, K), lambda f, c: (0, 0)),             # Wt (resident)
                pl.BlockSpec((Nc, 1), lambda f, c: (0, 0)),             # bias column
            ],
            out_specs=pl.BlockSpec((bf, Nc, tile_p), lambda f, c: (f, 0, c)),
        ),
        compiler_params=pltpu.CompilerParams(
            dimension_semantics=("parallel", "parallel"),
            vmem_limit_bytes=budget),
    )(x3, wT, bias_col)


def patch_decode_time_series(x, weight, bias, *, patch_size, embed_dim,
                             out_chans, time_span):
    """x: (B, T, N, P); weight: (embed_dim, conv_out, p, p); bias: (conv_out,)."""
    B, T, N, P = x.shape
    assert T % time_span == 0
    ps = int(round(P ** 0.5))
    assert ps * ps == P
    Tc = T // time_span
    assert Tc * N == embed_dim, "frame.view(B, embed_dim, ps, ps) requires Tc*N == embed_dim"
    assert out_chans % time_span == 0
    conv_out = out_chans // time_span
    p = patch_size
    Nc = conv_out * p * p
    F = B * time_span

    # torch.split(dim=1) + frame.view(B, embed_dim, ps, ps) is a contiguous
    # reshape -> (F, embed_dim, P).  Free; used directly as the GEMM RHS.
    x3 = x.reshape(F, embed_dim, P)

    # ConvTranspose2d weight (in, out, kH, kW) -> transposed GEMM weight (Nc, K)
    # (one tiny wrapper-side transpose; no lane zero-padding needed anymore).
    wT = jnp.transpose(weight.reshape(embed_dim, Nc)).astype(x3.dtype)
    bias_col = jnp.repeat(bias, p * p).reshape(Nc, 1).astype(x3.dtype)

    out_mat = _decode_frames(x3, wT, bias_col)            # (F, Nc, P)

    # Scatter each column's (conv_out, p, p) patch into the final
    # (B, time_span*conv_out, H, W) image.
    # TODO(synk): the fine-grained (co,p,p,ps,ps)->(co,H,W) lane interleave has
    # no robust in-kernel Mosaic lowering, so this one permutation stays in XLA
    # (now over Nc real columns only -- no pad columns to read back).
    y = out_mat.reshape(B, time_span, conv_out, p, p, ps, ps)
    y = jnp.transpose(y, (0, 1, 2, 5, 3, 6, 4))           # (B, ts, co, ps, p, ps, p)
    return y.reshape(B, time_span * conv_out, ps * p, ps * p)


def _reference(x, weight, bias, *, patch_size, embed_dim, out_chans, time_span):
    """Pure-JAX emulation of the PyTorch forward (ConvTranspose2d as einsum)."""
    B, T, N, P = x.shape
    ps = int(round(P ** 0.5))
    Tc = T // time_span
    conv_out = out_chans // time_span
    frames = x.reshape(B, time_span, Tc * N, ps, ps)      # (B, ts, embed, ps, ps)
    out = jnp.einsum('bteij,ecad->btciajd', frames, weight,
                     precision=jax.lax.Precision.HIGHEST)
    out = out + bias[None, None, :, None, None, None, None]
    return out.reshape(B, time_span * conv_out, ps * patch_size, ps * patch_size)


if __name__ == "__main__":
    # Small but sublane/lane-friendly shapes consistent with the module.
    patch_size = 4
    time_span = 2
    out_chans = 6                       # conv_out = 3 -> Nc = 48 (multiple of 8)
    B, N = 2, 16
    Tc = 8
    embed_dim = Tc * N                  # 128
    T = time_span * Tc                  # 16
    ps = 8
    P = ps * ps                         # 64
    conv_out = out_chans // time_span

    key = jax.random.PRNGKey(0)
    kx, kw = jax.random.split(key)
    x = jax.random.normal(kx, (B, T, N, P), dtype=jnp.float32)

    # Deterministic xavier_uniform_-style init for ConvTranspose2d weight, zero bias.
    fan_in = conv_out * patch_size * patch_size
    fan_out = embed_dim * patch_size * patch_size
    bound = (6.0 / (fan_in + fan_out)) ** 0.5
    weight = jax.random.uniform(kw, (embed_dim, conv_out, patch_size, patch_size),
                                dtype=jnp.float32, minval=-bound, maxval=bound)
    bias = jnp.zeros((conv_out,), dtype=jnp.float32)

    y = patch_decode_time_series(x, weight, bias, patch_size=patch_size,
                                 embed_dim=embed_dim, out_chans=out_chans,
                                 time_span=time_span)
    y = jax.block_until_ready(y)

    y_ref = _reference(x, weight, bias, patch_size=patch_size, embed_dim=embed_dim,
                       out_chans=out_chans, time_span=time_span)

    H = W = ps * patch_size
    assert y.shape == (B, time_span * conv_out, H, W), y.shape
    assert jnp.allclose(y, y_ref, atol=1e-5, rtol=1e-5), "mismatch vs reference"
    print("KERNEL_OK")
</pallas_src>

<mosaic_0001>
module attributes {stable_mosaic.version = 11 : i64} {
  func.func @_decode_frames_kernel(%arg0: i32, %arg1: i32, %arg2: memref<2x128x64xf32, #tpu.memory_space<vmem>>, %arg3: memref<48x128xf32, #tpu.memory_space<vmem>>, %arg4: memref<48x1xf32, #tpu.memory_space<vmem>>, %arg5: memref<2x48x64xf32, #tpu.memory_space<vmem>>) attributes {dimension_semantics = [#tpu.dimension_semantics<parallel>, #tpu.dimension_semantics<parallel>], iteration_bounds = array<i64: 2, 1>, scalar_prefetch = 0 : i64, scratch_operands = 0 : i64, tpu.core_type = #tpu.core_type<tc>, window_params = [{transform_indices = @transform_0, window_bounds = array<i64: 2, 128, 64>}, {pipeline_mode = #tpu.pipeline_mode<synchronous>, transform_indices = @transform_1, window_bounds = array<i64: 48, 128>}, {pipeline_mode = #tpu.pipeline_mode<synchronous>, transform_indices = @transform_2, window_bounds = array<i64: 48, 1>}, {transform_indices = @transform_3, window_bounds = array<i64: 2, 48, 64>}]} {
    %c0 = arith.constant 0 : index
    %c0_0 = arith.constant 0 : index
    %0 = vector.load %arg3[%c0, %c0_0] : memref<48x128xf32, #tpu.memory_space<vmem>>, vector<48x128xf32>
    %c0_1 = arith.constant 0 : index
    %c0_2 = arith.constant 0 : index
    %1 = vector.load %arg4[%c0_1, %c0_2] : memref<48x1xf32, #tpu.memory_space<vmem>>, vector<48x1xf32>
    %c0_3 = arith.constant 0 : index
    %c0_4 = arith.constant 0 : index
    %c0_5 = arith.constant 0 : index
    %2 = vector.load %arg2[%c0_3, %c0_4, %c0_5] : memref<2x128x64xf32, #tpu.memory_space<vmem>>, vector<1x128x64xf32>
    %3 = vector.shape_cast %2 : vector<1x128x64xf32> to vector<128x64xf32>
    %cst = arith.constant dense<0.000000e+00> : vector<48x64xf32>
    %4 = tpu.matmul %0, %3, %cst {dimension_numbers = #tpu.dot_dimension_numbers<[1], [0], [0], [1], [0, 0, 1, 1], [], []>} : vector<48x128xf32>, vector<128x64xf32>, vector<48x64xf32> -> vector<48x64xf32>
    %5 = vector.broadcast %1 : vector<48x1xf32> to vector<48x64xf32>
    %6 = arith.addf %4, %5 : vector<48x64xf32>
    %c0_6 = arith.constant 0 : index
    %c0_7 = arith.constant 0 : index
    %c0_8 = arith.constant 0 : index
    %7 = vector.load %arg5[%c0_6, %c0_7, %c0_8] : memref<2x48x64xf32, #tpu.memory_space<vmem>>, vector<1x48x64xf32>
    %8 = vector.shape_cast %7 : vector<1x48x64xf32> to vector<48x64xf32>
    %9 = vector.shape_cast %6 : vector<48x64xf32> to vector<1x48x64xf32>
    tpu.vector_store %arg5[%c0_6, %c0_7, %c0_8], %9 {strides = array<i32>} : memref<2x48x64xf32, #tpu.memory_space<vmem>>, vector<1x48x64xf32>,
    %c1 = arith.constant 1 : index
    %c0_9 = arith.constant 0 : index
    %c0_10 = arith.constant 0 : index
    %10 = vector.load %arg2[%c1, %c0_9, %c0_10] : memref<2x128x64xf32, #tpu.memory_space<vmem>>, vector<1x128x64xf32>
    %11 = vector.shape_cast %10 : vector<1x128x64xf32> to vector<128x64xf32>
    %cst_11 = arith.constant dense<0.000000e+00> : vector<48x64xf32>
    %12 = tpu.matmul %0, %11, %cst_11 {dimension_numbers = #tpu.dot_dimension_numbers<[1], [0], [0], [1], [0, 0, 1, 1], [], []>} : vector<48x128xf32>, vector<128x64xf32>, vector<48x64xf32> -> vector<48x64xf32>
    %13 = vector.broadcast %1 : vector<48x1xf32> to vector<48x64xf32>
    %14 = arith.addf %12, %13 : vector<48x64xf32>
    %c1_12 = arith.constant 1 : index
    %c0_13 = arith.constant 0 : index
    %c0_14 = arith.constant 0 : index
    %15 = vector.load %arg5[%c1_12, %c0_13, %c0_14] : memref<2x48x64xf32, #tpu.memory_space<vmem>>, vector<1x48x64xf32>
    %16 = vector.shape_cast %15 : vector<1x48x64xf32> to vector<48x64xf32>
    %17 = vector.shape_cast %14 : vector<48x64xf32> to vector<1x48x64xf32>
    tpu.vector_store %arg5[%c1_12, %c0_13, %c0_14], %17 {strides = array<i32>} : memref<2x48x64xf32, #tpu.memory_space<vmem>>, vector<1x48x64xf32>,
    return
  }
  func.func @transform_0(%arg0: i32, %arg1: i32) -> (i32, i32, i32) {
    %c0_i32 = arith.constant 0 : i32
    %c0_i32_0 = arith.constant 0 : i32
    return %arg0, %c0_i32, %arg1 : i32, i32, i32
  }
  func.func @transform_1(%arg0: i32, %arg1: i32) -> (i32, i32) {
    %c0_i32 = arith.constant 0 : i32
    %c0_i32_0 = arith.constant 0 : i32
    %c0_i32_1 = arith.constant 0 : i32
    return %c0_i32, %c0_i32_0 : i32, i32
  }
  func.func @transform_2(%arg0: i32, %arg1: i32) -> (i32, i32) {
    %c0_i32 = arith.constant 0 : i32
    %c0_i32_0 = arith.constant 0 : i32
    %c0_i32_1 = arith.constant 0 : i32
    return %c0_i32, %c0_i32_0 : i32, i32
  }
  func.func @transform_3(%arg0: i32, %arg1: i32) -> (i32, i32, i32) {
    %c0_i32 = arith.constant 0 : i32
    %c0_i32_0 = arith.constant 0 : i32
    return %arg0, %c0_i32, %arg1 : i32, i32, i32
  }
}

</mosaic_0001>

<llo_original>
// kernel: tpu_custom_call.1
$region0: #{tpu_custom_call.1}
  #allocation0 [shape = 'u32[]', space=smem, size = 0x4, offset = 0x4, fixed_abs, tag = 'smem constant byte address 0x4 - core index']
  #allocation1 [shape = 'u32[144,128]{1,0:T(1,128)}', space=vmem, size = 0x12000, scoped, tag = 'internal scratch']
  %s0 = inlined_call_operand.vmem [shape: f32[4,128,64], index: 0, kind: input, shape index: {}]
  %s1 = inlined_call_operand.vmem [shape: f32[48,128], index: 1, kind: input, shape index: {}]
  %s2 = inlined_call_operand.vmem [shape: f32[48,1], index: 2, kind: input, shape index: {}]
  %s3 = inlined_call_operand.hbm [shape: f32[4,48,64], index: 3, kind: output, shape index: {}]
  %s4 = sld [smem:[#allocation0]]
  $region45: #{tpu_custom_call.1} parent=0
    _
  %s6 = ssub.s32 1, %s4
  %s7 = scalar_select 0, %s6, %s4
  $region1: #{tpu_custom_call.1} parent=0
    #allocation2 [shape = 'u8[98304]{0}', space=vmem, size = 0x18000, scoped, tag = 'output window, operand 0']
    #allocation3 [shape = 's32[2]{0}', space=sflag, size = 0x8, scoped, tag = 'scoped memory for tpu_custom_call.1']
    %8 = vsyncpa [#allocation3], 0
    %s9 = scalar_lea.sflag [#allocation3], 1
    %10 = vsyncpa %s9, 0
    loop: start=0, step=1, limit=4
    $region2: #{tpu_custom_call.1} parent=1 // loop_pre_header
      _
    $region3: #{tpu_custom_call.1} parent=1 // loop_header
      %s12 = sphi 0, %s16
      %p13 = scmp.ge.s32.totalorder %s12, 4
      %s19 = sphi 0, %s31
      %s20 = sphi 0, %s27
      %s21 = sphi 0, %s19
      %s22 = sphi 0, %s20
      %s23 = sphi 0, %s21
      %s24 = sphi 0, %s22
      %s36 = sphi 0, %s38
      %s39 = sphi 0, %s36
      %s40 = sphi 0, %s39
      %s56 = sphi 0, %s40
      %s60 = sphi 0, %s60
      %s62 = sphi 0, %s60
      %s63 = sphi 0, %s62
      %s77 = sphi 0, %s63
      %s81 = sphi 0, %s81
      %s83 = sphi 0, %s81
      %s84 = sphi 0, %s83
      %s98 = sphi 0, %s84
      %s106 = sphi 0, %s108
      %s109 = sphi 0, %s106
      %s110 = sphi 0, %s109
      %s126 = sphi 0, %s110
    $region4: #{tpu_custom_call.1} parent=1 // loop_header_branch
      %15 = sbr.rel (%p13) target = $region8
    $region5: #{tpu_custom_call.1} parent=1 // loop_body
      %s17 = ssub.s32 %s12, 1
      %s18 = ssub.s32 %s12, 2
      %s25 = sadd.s32 1, %s20
      %p26 = scmp.ge.s32.totalorder %s25, 1
      %s27 = scalar_select %p26, 0, %s25
      %s28 = sadd.s32 1, %s19
      %s29 = scalar_select %p26, %s28, %s19
      %p30 = scmp.ge.s32.totalorder %s29, 2
      %s31 = scalar_select %p30, 0, %s29
      %s32 = ssub.s32 %s19, %s31
      %s33 = ssub.s32 %s20, %s27
      %s34 = sor.u32 %s32, %s33
      %p35 = scmp.eq.s32.totalorder %s34, 0
      %s37 = sadd.s32 %s36, 1
      %s38 = scalar_select %p35, %s36, %s37
      %p41 = pneg %p35
      %p42 = scmp.eq.s32.totalorder %s12, 1
      %p43 = por %p41, %p42
      %p44 = scmp.ne.s32.totalorder %s36, %s39
      %p45 = scmp.eq.s32.totalorder %s12, 0
      %p46 = por %p44, %p45
      %p47 = scmp.ne.s32.totalorder %s36, %s39
      %p48 = scmp.eq.s32.totalorder %s17, 1
      %p49 = por %p47, %p48
      %p50 = scmp.ne.s32.totalorder %s39, %s40
      %p51 = scmp.eq.s32.totalorder %s17, 0
      %p52 = por %p50, %p51
      %p53 = scmp.ne.s32.totalorder %s39, %s40
      %p54 = scmp.eq.s32.totalorder %s18, 1
      %p55 = por %p53, %p54
      %p57 = scmp.ne.s32.totalorder %s40, %s56
      %p58 = scmp.eq.s32.totalorder %s18, 0
      %p59 = por %p57, %p58
      %s61 = sadd.s32 %s60, 1
      %p64 = scmp.eq.s32.totalorder %s12, 1
      %p65 = scmp.ne.s32.totalorder %s60, %s62
      %p66 = scmp.eq.s32.totalorder %s12, 0
      %p67 = por %p65, %p66
      %p68 = scmp.ne.s32.totalorder %s60, %s62
      %p69 = scmp.eq.s32.totalorder %s17, 1
      %p70 = por %p68, %p69
      %p71 = scmp.ne.s32.totalorder %s62, %s63
      %p72 = scmp.eq.s32.totalorder %s17, 0
      %p73 = por %p71, %p72
      %p74 = scmp.ne.s32.totalorder %s62, %s63
      %p75 = scmp.eq.s32.totalorder %s18, 1
      %p76 = por %p74, %p75
      %p78 = scmp.ne.s32.totalorder %s63, %s77
      %p79 = scmp.eq.s32.totalorder %s18, 0
      %p80 = por %p78, %p79
      %s82 = sadd.s32 %s81, 1
      %p85 = scmp.eq.s32.totalorder %s12, 1
      %p86 = scmp.ne.s32.totalorder %s81, %s83
      %p87 = scmp.eq.s32.totalorder %s12, 0
      %p88 = por %p86, %p87
      %p89 = scmp.ne.s32.totalorder %s81, %s83
      %p90 = scmp.eq.s32.totalorder %s17, 1
      %p91 = por %p89, %p90
      %p92 = scmp.ne.s32.totalorder %s83, %s84
      %p93 = scmp.eq.s32.totalorder %s17, 0
      %p94 = por %p92, %p93
      %p95 = scmp.ne.s32.totalorder %s83, %s84
      %p96 = scmp.eq.s32.totalorder %s18, 1
      %p97 = por %p95, %p96
      %p99 = scmp.ne.s32.totalorder %s84, %s98
      %p100 = scmp.eq.s32.totalorder %s18, 0
      %p101 = por %p99, %p100
      %s102 = ssub.s32 %s19, %s31
      %s103 = ssub.s32 %s20, %s27
      %s104 = sor.u32 %s102, %s103
      %p105 = scmp.eq.s32.totalorder %s104, 0
      %s107 = sadd.s32 %s106, 1
      %s108 = scalar_select %p105, %s106, %s107
      %p111 = pneg %p105
      %p112 = scmp.eq.s32.totalorder %s12, 1
      %p113 = por %p111, %p112
      %p114 = scmp.ne.s32.totalorder %s106, %s109
      %p115 = scmp.eq.s32.totalorder %s12, 0
      %p116 = por %p114, %p115
      %p117 = scmp.ne.s32.totalorder %s106, %s109
      %p118 = scmp.eq.s32.totalorder %s17, 1
      %p119 = por %p117, %p118
      %p120 = scmp.ne.s32.totalorder %s109, %s110
      %p121 = scmp.eq.s32.totalorder %s17, 0
      %p122 = por %p120, %p121
      %p123 = scmp.ne.s32.totalorder %s109, %s110
      %p124 = scmp.eq.s32.totalorder %s18, 1
      %p125 = por %p123, %p124
      %p127 = scmp.ne.s32.totalorder %s110, %s126
      %p128 = scmp.eq.s32.totalorder %s18, 0
      %p129 = por %p127, %p128
      %p130 = scmp.le.s32.totalorder 1, %s12
      %p131 = scmp.lt.s32.totalorder %s12, 3
      %p132 = pnand %p130, %p131
      %p133 = pneg %p132
      // Predicated region
      $region9: #{tpu_custom_call.1} parent=5 // pred_check
        _
      $region10: #{tpu_custom_call.1} parent=5 // pred_check_branch
        %135 = sbr.rel (%p132) target = $region12
      $region11: #{tpu_custom_call.1} parent=5 // pred_region
        %s136 = ssub.s32 %s12, 1
        // Predicated region
        $region13: #{tpu_custom_call.1} parent=11 // pred_check
          %p137 = pneg %p73
        $region14: #{tpu_custom_call.1} parent=11 // pred_check_branch
          %139 = sbr.rel (%p137) target = $region16
        $region15: #{tpu_custom_call.1} parent=11 // pred_region
          _
        $region16: #{tpu_custom_call.1} parent=11 // pred_fallthru
          _
        // Predicated region
        $region17: #{tpu_custom_call.1} parent=11 // pred_check
          %p140 = pneg %p94
        $region18: #{tpu_custom_call.1} parent=11 // pred_check_branch
          %142 = sbr.rel (%p140) target = $region20
        $region19: #{tpu_custom_call.1} parent=11 // pred_region
          _
        $region20: #{tpu_custom_call.1} parent=11 // pred_fallthru
          _
      $region12: #{tpu_custom_call.1} parent=5 // pred_fallthru
        _
      %p143 = scmp.lt.s32.totalorder %s12, 2
      // Predicated region
      $region21: #{tpu_custom_call.1} parent=5 // pred_check
        %p144 = pneg %p143
      $region22: #{tpu_custom_call.1} parent=5 // pred_check_branch
        %146 = sbr.rel (%p144) target = $region24
      $region23: #{tpu_custom_call.1} parent=5 // pred_region
        // Predicated region
        $region25: #{tpu_custom_call.1} parent=23 // pred_check
          %p147 = pneg %p46
        $region26: #{tpu_custom_call.1} parent=23 // pred_check_branch
          %149 = sbr.rel (%p147) target = $region28
        $region27: #{tpu_custom_call.1} parent=23 // pred_region
          %s150 = smul.u32 2, %s19
          %p151 = scmp.lt.s32.totalorder %s150, 3
          %s152 = scalar_select %p151, %s150, 3
          %p153 = scmp.lt.s32.totalorder %s20, 0
          %s154 = scalar_select %p153, %s20, 0
          %s155 = smul.addr %s152, 16
          %s156 = sadd.s32 %s154, %s155
          %s157 = smul.addr %s156, 8
          %s158 = scalar_lea.vmem %s0, %s157
          %s159 = smul.u32 2, %s19
        $region28: #{tpu_custom_call.1} parent=23 // pred_fallthru
          _
      $region24: #{tpu_custom_call.1} parent=5 // pred_fallthru
        _
      %p160 = scmp.le.s32.totalorder 1, %s12
      %p161 = scmp.lt.s32.totalorder %s12, 3
      %p162 = pnand %p160, %p161
      %p163 = pneg %p162
      // Predicated region
      $region29: #{tpu_custom_call.1} parent=5 // pred_check
        _
      $region30: #{tpu_custom_call.1} parent=5 // pred_check_branch
        %165 = sbr.rel (%p162) target = $region32
      $region31: #{tpu_custom_call.1} parent=5 // pred_region
        %s166 = ssub.s32 %s12, 1
        %s167 = smul.u32 2, %s21
        %p168 = scmp.lt.s32.totalorder %s167, 3
        %s169 = scalar_select %p168, %s167, 3
        %p170 = scmp.lt.s32.totalorder %s22, 0
        %s171 = scalar_select %p170, %s22, 0
        %s172 = smul.addr %s169, 16
        %s173 = sadd.s32 %s171, %s172
        %s174 = smul.addr %s173, 8
        %s175 = scalar_lea.vmem %s0, %s174
        %p176 = pneg %p52
        %p177 = pneg %p49
        %p178 = pneg %p73
        %p179 = pneg %p70
        %p180 = pneg %p94
        %p181 = pneg %p91
        %p182 = pneg %p122
        %p183 = pneg %p119
        %s184 = sand.u32 %s109, 1
        %s185 = scalar_lea.sflag [#allocation3], %s184
        %s186 = sand.u32 %s109, 1
        %s187 = smul.addr %s186, 96
        %s188 = scalar_lea.vmem [#allocation2], %s187
        %s189 = smul.u32 2, %s21
        %p190 = scmp.lt.s32.totalorder %s189, 3
        %s191 = scalar_select %p190, %s189, 3
        %p192 = scmp.lt.s32.totalorder %s22, 0
        %s193 = scalar_select %p192, %s22, 0
        %s194 = smul.addr %s191, 16
        %s195 = sadd.s32 %s193, %s194
        %s196 = smul.addr %s195, 8
        %s197 = scalar_lea.vmem %s0, %s196
        %s198 = smul.u32 2, %s21
        %s199 = smul.u32 2, %s21
        %v200 = vld [vmem:[%s1] sm:$0xff]
        %v201 = vld [vmem:[%s1 + $0x8] sm:$0xff]
        %v202 = vld [vmem:[%s1 + $0x10] sm:$0xff]
        %v203 = vld [vmem:[%s1 + $0x18] sm:$0xff]
        %v204 = vld [vmem:[%s1 + $0x20] sm:$0xff]
        %v205 = vld [vmem:[%s1 + $0x28] sm:$0xff]
        %v206 = vld [vmem:[%s2] sm:$0xff]
        %v207 = vld [vmem:[%s2 + $0x8] sm:$0xff]
        %v208 = vld [vmem:[%s2 + $0x10] sm:$0xff]
        %v209 = vld [vmem:[%s2 + $0x18] sm:$0xff]
        %v210 = vld [vmem:[%s2 + $0x20] sm:$0xff]
        %v211 = vld [vmem:[%s2 + $0x28] sm:$0xff]
        %v212 = vld [vmem:[%s197] sm:$0xff]
        %v213 = vld [vmem:[%s197 + $0x8] sm:$0xff]
        %v214 = vld [vmem:[%s197 + $0x10] sm:$0xff]
        %v215 = vld [vmem:[%s197 + $0x18] sm:$0xff]
        %v216 = vld [vmem:[%s197 + $0x20] sm:$0xff]
        %v217 = vld [vmem:[%s197 + $0x28] sm:$0xff]
        %v218 = vld [vmem:[%s197 + $0x30] sm:$0xff]
        %v219 = vld [vmem:[%s197 + $0x38] sm:$0xff]
        %v220 = vld [vmem:[%s197 + $0x40] sm:$0xff]
        %v221 = vld [vmem:[%s197 + $0x48] sm:$0xff]
        %v222 = vld [vmem:[%s197 + $0x50] sm:$0xff]
        %v223 = vld [vmem:[%s197 + $0x58] sm:$0xff]
        %v224 = vld [vmem:[%s197 + $0x60] sm:$0xff]
        %v225 = vld [vmem:[%s197 + $0x68] sm:$0xff]
        %v226 = vld [vmem:[%s197 + $0x70] sm:$0xff]
        %v227 = vld [vmem:[%s197 + $0x78] sm:$0xff]
        %229 = vset.pattern.permute.xlu0 0
        %230 = vperm.xlu0 %229, %v206
        %v231 = vpop.permute.xlu0 %230
        %234 = vset.pattern.permute.xlu0 0
        %235 = vperm.xlu0 %234, %v207
        %v236 = vpop.permute.xlu0 %235
        %239 = vset.pattern.permute.xlu0 0
        %240 = vperm.xlu0 %239, %v208
        %v241 = vpop.permute.xlu0 %240
        %244 = vset.pattern.permute.xlu0 0
        %245 = vperm.xlu0 %244, %v209
        %v246 = vpop.permute.xlu0 %245
        %249 = vset.pattern.permute.xlu0 0
        %250 = vperm.xlu0 %249, %v210
        %v251 = vpop.permute.xlu0 %250
        %254 = vset.pattern.permute.xlu0 0
        %255 = vperm.xlu0 %254, %v211
        %v256 = vpop.permute.xlu0 %255
        %258 = vmatprep.subr.mxu0 0.0
        %259 = vmatpush1.msra.mxu0 %v212
        %260 = vmatprep.subr.mxu0 0.0
        %261 = vmatpush1.msra.mxu0 %v213
        %262 = vmatprep.subr.mxu0 0.0
        %263 = vmatpush1.msra.mxu0 %v214
        %264 = vmatprep.subr.mxu0 0.0
        %265 = vmatpush1.msra.mxu0 %v215
        %266 = vmatprep.subr.mxu0 0.0
        %267 = vmatpush1.msra.mxu0 %v216
        %268 = vmatprep.subr.mxu0 0.0
        %269 = vmatpush1.msra.mxu0 %v217
        %270 = vmatprep.subr.mxu0 0.0
        %271 = vmatpush1.msra.mxu0 %v218
        %272 = vmatprep.subr.mxu0 0.0
        %273 = vmatpush1.msra.mxu0 %v219
        %274 = vmatprep.subr.mxu0 0.0
        %275 = vmatpush1.msra.mxu0 %v220
        %276 = vmatprep.subr.mxu0 0.0
        %277 = vmatpush1.msra.mxu0 %v221
        %278 = vmatprep.subr.mxu0 0.0
        %279 = vmatpush1.msra.mxu0 %v222
        %280 = vmatprep.subr.mxu0 0.0
        %281 = vmatpush1.msra.mxu0 %v223
        %282 = vmatprep.subr.mxu0 0.0
        %283 = vmatpush1.msra.mxu0 %v224
        %284 = vmatprep.subr.mxu0 0.0
        %285 = vmatpush1.msra.mxu0 %v225
        %286 = vmatprep.subr.mxu0 0.0
        %287 = vmatpush1.msra.mxu0 %v226
        %288 = vmatprep.subr.mxu0 0.0
        %289 = vmatpush1.msra.mxu0 %v227
        %290 = vmatprep.subr.mxu0 0.0
        %291 = vmatpush1.msra.mxu0 0.0
        %292 = vmatprep.subr.mxu0 0.0
        %293 = vmatpush1.msra.mxu0 0.0
        %294 = vmatprep.subr.mxu0 0.0
        %295 = vmatpush1.msra.mxu0 0.0
        %296 = vmatprep.subr.mxu0 0.0
        %297 = vmatpush1.msra.mxu0 0.0
        %298 = vmatprep.subr.mxu0 0.0
        %299 = vmatpush1.msra.mxu0 0.0
        %300 = vmatprep.subr.mxu0 0.0
        %301 = vmatpush1.msra.mxu0 0.0
        %302 = vmatprep.subr.mxu0 0.0
        %303 = vmatpush1.msra.mxu0 0.0
        %304 = vmatprep.subr.mxu0 0.0
        %305 = vmatpush1.msra.mxu0 0.0
        %306 = vmatprep.subr.mxu0 0.0
        %307 = vmatpush1.msra.mxu0 0.0
        %308 = vmatprep.subr.mxu0 0.0
        %309 = vmatpush1.msra.mxu0 0.0
        %310 = vmatprep.subr.mxu0 0.0
        %311 = vmatpush1.msra.mxu0 0.0
        %312 = vmatprep.subr.mxu0 0.0
        %313 = vmatpush1.msra.mxu0 0.0
        %314 = vmatprep.subr.mxu0 0.0
        %315 = vmatpush1.msra.mxu0 0.0
        %316 = vmatprep.subr.mxu0 0.0
        %317 = vmatpush1.msra.mxu0 0.0
        %318 = vmatprep.subr.mxu0 0.0
        %319 = vmatpush1.msra.mxu0 0.0
        %320 = vmatprep.subr.mxu0 0.0
        %321 = vmatpush1.msra.mxu0 0.0
        %322 = vmatprep.mubr.f32.mxu0 0.0
        %323 = vmatmul.mubr.f32.gmra.mrb[0].mxu0 %v200
        %v324 = vpop.f32.mrb[0].mxu0
        %v325 = vadd.f32 %v231, %v324
        %v326 = vpop.f32.mrb[0].mxu0
        %327 = vmatprep.mubr.f32.mxu0 0.0
        %328 = vmatmul.mubr.f32.gmra.mrb[0].mxu0 %v201
        %v329 = vpop.f32.mrb[0].mxu0
        %v330 = vadd.f32 %v236, %v329
        %v331 = vpop.f32.mrb[0].mxu0
        %332 = vmatprep.mubr.f32.mxu0 0.0
        %333 = vmatmul.mubr.f32.gmra.mrb[0].mxu0 %v202
        %v334 = vpop.f32.mrb[0].mxu0
        %v335 = vadd.f32 %v241, %v334
        %v336 = vpop.f32.mrb[0].mxu0
        %337 = vmatprep.mubr.f32.mxu0 0.0
        %338 = vmatmul.mubr.f32.gmra.mrb[0].mxu0 %v203
        %v339 = vpop.f32.mrb[0].mxu0
        %v340 = vadd.f32 %v246, %v339
        %v341 = vpop.f32.mrb[0].mxu0
        %342 = vmatprep.mubr.f32.mxu0 0.0
        %343 = vmatmul.mubr.f32.gmra.mrb[0].mxu0 %v204
        %v344 = vpop.f32.mrb[0].mxu0
        %v345 = vadd.f32 %v251, %v344
        %v346 = vpop.f32.mrb[0].mxu0
        %347 = vmatprep.mubr.f32.mxu0 0.0
        %348 = vmatmul.mubr.f32.gmra.mrb[0].mxu0 %v205
        %v349 = vpop.f32.mrb[0].mxu0
        %v350 = vadd.f32 %v256, %v349
        %v351 = vpop.f32.mrb[0].mxu0
        %352 = vdwg.mxu0
        %vm353 = vcmask 523264
        %354 = vst.msk [vmem:[%s188] sm:$0xff] %vm353, %v325
        %355 = vst.msk [vmem:[%s188 + $0x8] sm:$0xff] %vm353, %v330
        %356 = vst.msk [vmem:[%s188 + $0x10] sm:$0xff] %vm353, %v335
        %357 = vst.msk [vmem:[%s188 + $0x18] sm:$0xff] %vm353, %v340
        %358 = vst.msk [vmem:[%s188 + $0x20] sm:$0xff] %vm353, %v345
        %359 = vst.msk [vmem:[%s188 + $0x28] sm:$0xff] %vm353, %v350
        %s360 = scalar_lea.vmem %s197, 128
        %v361 = vld [vmem:[%s360] sm:$0xff]
        %v362 = vld [vmem:[%s360 + $0x8] sm:$0xff]
        %v363 = vld [vmem:[%s360 + $0x10] sm:$0xff]
        %v364 = vld [vmem:[%s360 + $0x18] sm:$0xff]
        %v365 = vld [vmem:[%s360 + $0x20] sm:$0xff]
        %v366 = vld [vmem:[%s360 + $0x28] sm:$0xff]
        %v367 = vld [vmem:[%s360 + $0x30] sm:$0xff]
        %v368 = vld [vmem:[%s360 + $0x38] sm:$0xff]
        %v369 = vld [vmem:[%s360 + $0x40] sm:$0xff]
        %v370 = vld [vmem:[%s360 + $0x48] sm:$0xff]
        %v371 = vld [vmem:[%s360 + $0x50] sm:$0xff]
        %v372 = vld [vmem:[%s360 + $0x58] sm:$0xff]
        %v373 = vld [vmem:[%s360 + $0x60] sm:$0xff]
        %v374 = vld [vmem:[%s360 + $0x68] sm:$0xff]
        %v375 = vld [vmem:[%s360 + $0x70] sm:$0xff]
        %v376 = vld [vmem:[%s360 + $0x78] sm:$0xff]
        %377 = vmatprep.subr.mxu0 0.0
        %378 = vmatpush1.msra.mxu0 %v361
        %379 = vmatprep.subr.mxu0 0.0
        %380 = vmatpush1.msra.mxu0 %v362
        %381 = vmatprep.subr.mxu0 0.0
        %382 = vmatpush1.msra.mxu0 %v363
        %383 = vmatprep.subr.mxu0 0.0
        %384 = vmatpush1.msra.mxu0 %v364
        %385 = vmatprep.subr.mxu0 0.0
        %386 = vmatpush1.msra.mxu0 %v365
        %387 = vmatprep.subr.mxu0 0.0
        %388 = vmatpush1.msra.mxu0 %v366
        %389 = vmatprep.subr.mxu0 0.0
        %390 = vmatpush1.msra.mxu0 %v367
        %391 = vmatprep.subr.mxu0 0.0
        %392 = vmatpush1.msra.mxu0 %v368
        %393 = vmatprep.subr.mxu0 0.0
        %394 = vmatpush1.msra.mxu0 %v369
        %395 = vmatprep.subr.mxu0 0.0
        %396 = vmatpush1.msra.mxu0 %v370
        %397 = vmatprep.subr.mxu0 0.0
        %398 = vmatpush1.msra.mxu0 %v371
        %399 = vmatprep.subr.mxu0 0.0
        %400 = vmatpush1.msra.mxu0 %v372
        %401 = vmatprep.subr.mxu0 0.0
        %402 = vmatpush1.msra.mxu0 %v373
        %403 = vmatprep.subr.mxu0 0.0
        %404 = vmatpush1.msra.mxu0 %v374
        %405 = vmatprep.subr.mxu0 0.0
        %406 = vmatpush1.msra.mxu0 %v375
        %407 = vmatprep.subr.mxu0 0.0
        %408 = vmatpush1.msra.mxu0 %v376
        %409 = vmatprep.subr.mxu0 0.0
        %410 = vmatpush1.msra.mxu0 0.0
        %411 = vmatprep.subr.mxu0 0.0
        %412 = vmatpush1.msra.mxu0 0.0
        %413 = vmatprep.subr.mxu0 0.0
        %414 = vmatpush1.msra.mxu0 0.0
        %415 = vmatprep.subr.mxu0 0.0
        %416 = vmatpush1.msra.mxu0 0.0
        %417 = vmatprep.subr.mxu0 0.0
        %418 = vmatpush1.msra.mxu0 0.0
        %419 = vmatprep.subr.mxu0 0.0
        %420 = vmatpush1.msra.mxu0 0.0
        %421 = vmatprep.subr.mxu0 0.0
        %422 = vmatpush1.msra.mxu0 0.0
        %423 = vmatprep.subr.mxu0 0.0
        %424 = vmatpush1.msra.mxu0 0.0
        %425 = vmatprep.subr.mxu0 0.0
        %426 = vmatpush1.msra.mxu0 0.0
        %427 = vmatprep.subr.mxu0 0.0
        %428 = vmatpush1.msra.mxu0 0.0
        %429 = vmatprep.subr.mxu0 0.0
        %430 = vmatpush1.msra.mxu0 0.0
        %431 = vmatprep.subr.mxu0 0.0
        %432 = vmatpush1.msra.mxu0 0.0
        %433 = vmatprep.subr.mxu0 0.0
        %434 = vmatpush1.msra.mxu0 0.0
        %435 = vmatprep.subr.mxu0 0.0
        %436 = vmatpush1.msra.mxu0 0.0
        %437 = vmatprep.subr.mxu0 0.0
        %438 = vmatpush1.msra.mxu0 0.0
        %439 = vmatprep.subr.mxu0 0.0
        %440 = vmatpush1.msra.mxu0 0.0
        %441 = vmatprep.mubr.f32.mxu0 0.0
        %442 = vmatmul.mubr.f32.gmra.mrb[0].mxu0 %v200
        %v443 = vpop.f32.mrb[0].mxu0
        %v444 = vadd.f32 %v231, %v443
        %v445 = vpop.f32.mrb[0].mxu0
        %446 = vmatprep.mubr.f32.mxu0 0.0
        %447 = vmatmul.mubr.f32.gmra.mrb[0].mxu0 %v201
        %v448 = vpop.f32.mrb[0].mxu0
        %v449 = vadd.f32 %v236, %v448
        %v450 = vpop.f32.mrb[0].mxu0
        %451 = vmatprep.mubr.f32.mxu0 0.0
        %452 = vmatmul.mubr.f32.gmra.mrb[0].mxu0 %v202
        %v453 = vpop.f32.mrb[0].mxu0
        %v454 = vadd.f32 %v241, %v453
        %v455 = vpop.f32.mrb[0].mxu0
        %456 = vmatprep.mubr.f32.mxu0 0.0
        %457 = vmatmul.mubr.f32.gmra.mrb[0].mxu0 %v203
        %v458 = vpop.f32.mrb[0].mxu0
        %v459 = vadd.f32 %v246, %v458
        %v460 = vpop.f32.mrb[0].mxu0
        %461 = vmatprep.mubr.f32.mxu0 0.0
        %462 = vmatmul.mubr.f32.gmra.mrb[0].mxu0 %v204
        %v463 = vpop.f32.mrb[0].mxu0
        %v464 = vadd.f32 %v251, %v463
        %v465 = vpop.f32.mrb[0].mxu0
        %466 = vmatprep.mubr.f32.mxu0 0.0
        %467 = vmatmul.mubr.f32.gmra.mrb[0].mxu0 %v205
        %v468 = vpop.f32.mrb[0].mxu0
        %v469 = vadd.f32 %v256, %v468
        %v470 = vpop.f32.mrb[0].mxu0
        %471 = vdwg.mxu0
        %s472 = scalar_lea.vmem %s188, 48 [#allocation2]
        %473 = vst.msk [vmem:[%s472] sm:$0xff] %vm353, %v444
        %474 = vst.msk [vmem:[%s472 + $0x8] sm:$0xff] %vm353, %v449
        %475 = vst.msk [vmem:[%s472 + $0x10] sm:$0xff] %vm353, %v454
        %476 = vst.msk [vmem:[%s472 + $0x18] sm:$0xff] %vm353, %v459
        %477 = vst.msk [vmem:[%s472 + $0x20] sm:$0xff] %vm353, %v464
        %478 = vst.msk [vmem:[%s472 + $0x28] sm:$0xff] %vm353, %v469
        %s479 = sand.u32 %s109, 1
        %s480 = scalar_lea.sflag [#allocation3], %s479
        %s481 = sand.u32 %s109, 1
        %s482 = smul.addr %s481, 96
        %s483 = scalar_lea.vmem [#allocation2], %s482
        // Predicated region
        $region33: #{tpu_custom_call.1} parent=31 // pred_check
          %p484 = pneg %p119
        $region34: #{tpu_custom_call.1} parent=31 // pred_check_branch
          %486 = sbr.rel (%p484) target = $region36
        $region35: #{tpu_custom_call.1} parent=31 // pred_region
          %s487 = smul.u32 2, %s21
          %s489 = ssub.s32 1536, 1536
          %490 = vsyncadd %s480, %s489
          %s491 = smul.addr %s487, 6
          %s492 = sadd.s32 %s22, %s491
          %s493 = smul.addr %s492, 128
          %s494 = scalar_lea.hbm %s3, %s493
          %s495 = sshll.u32 %s483, 4
          %s496 = int_to_ptr.vmem [resolvable:$true] %s495
          %501 = dma.vmem_to_hbm [thread:$0]  %s496, 1536, %s494, %s480, 128, 128, 8
        $region36: #{tpu_custom_call.1} parent=31 // pred_fallthru
          _
      $region32: #{tpu_custom_call.1} parent=5 // pred_fallthru
        _
      %p502 = scmp.le.s32.totalorder 2, %s12
      // Predicated region
      $region37: #{tpu_custom_call.1} parent=5 // pred_check
        %p503 = pneg %p502
      $region38: #{tpu_custom_call.1} parent=5 // pred_check_branch
        %505 = sbr.rel (%p503) target = $region40
      $region39: #{tpu_custom_call.1} parent=5 // pred_region
        %s506 = ssub.s32 %s12, 2
        // Predicated region
        $region41: #{tpu_custom_call.1} parent=39 // pred_check
          %p507 = pneg %p125
        $region42: #{tpu_custom_call.1} parent=39 // pred_check_branch
          %509 = sbr.rel (%p507) target = $region44
        $region43: #{tpu_custom_call.1} parent=39 // pred_region
          %s510 = sand.u32 %s110, 1
          %s511 = scalar_lea.sflag [#allocation3], %s510
          %s512 = sand.u32 %s110, 1
          %s513 = smul.addr %s512, 96
          %s514 = scalar_lea.vmem [#allocation2], %s513
          %515 = dma.done %s511, 1536
        $region44: #{tpu_custom_call.1} parent=39 // pred_fallthru
          _
      $region40: #{tpu_custom_call.1} parent=5 // pred_fallthru
        _
    $region6: #{tpu_custom_call.1} parent=1 // loop_footer
      %s16 = sadd.s32 1, %s12
    $region7: #{tpu_custom_call.1} parent=1 // loop_footer_branch
      %11 = sbr.rel target = $region3
    $region8: #{tpu_custom_call.1} parent=1 // loop_exit
      _
    %516 = vsyncpa [#allocation3], 1
    %s517 = scalar_lea.sflag [#allocation3], 1
    %518 = vsyncpa %s517, 1

</llo_original>
